<compile_context>
chip_gen: v6e
topology: v6e:2x2x1
jax: 0.10.0
libtpu: 0.0.40
codegen_flags: <defaults>
</compile_context>

<pallas_src>
import functools

import jax
import jax.numpy as jnp
from jax.experimental import pallas as pl
from jax.experimental.pallas import tpu as pltpu

_MiB = 1024 * 1024


def _cond_entropy_kernel(x_ref, o_ref, *, true_b, tile_b, tiles_per_split,
                         total_tiles, needs_mask):
    ci = pl.program_id(0)            # core-split axis
    ti = pl.program_id(1)            # batch-reduction axis ("arbitrary")

    # Zero the resident (1,1,1) accumulator at the start of each split.
    @pl.when(ti == 0)
    def _():
        o_ref[...] = jnp.zeros_like(o_ref)

    x = x_ref[...]                                       # (tile_b, C)
    if x.dtype != jnp.float32:                           # cast only if needed
        x = x.astype(jnp.float32)

    # Numerically-stable reduction along the class (lane) axis:
    #   sum_c p*logp = (sum_c e*s)/z - log z
    m = jnp.max(x, axis=1, keepdims=True)                # (tile_b, 1)  XLU
    s = x - m                                            # (tile_b, C)
    e = jnp.exp(s)                                       # EUP
    z = jnp.sum(e, axis=1, keepdims=True)                # (tile_b, 1)
    es = jnp.sum(e * s, axis=1, keepdims=True)           # (tile_b, 1)
    neg_ent = es / z - jnp.log(z)                        # (tile_b, 1)

    if needs_mask:
        # Unclamped tile id; t >= total_tiles-1 means the partial last tile or
        # a clamped overflow grid point -> mask rows past the true batch size.
        t = ci * tiles_per_split + ti
        is_edge = t >= (total_tiles - 1)

        @pl.when(is_edge)
        def _():
            row = t * tile_b + jax.lax.broadcasted_iota(
                jnp.int32, (tile_b, 1), 0)
            masked = jnp.where(row < true_b, neg_ent, 0.0)
            o_ref[...] += jnp.sum(masked, axis=0, keepdims=True)[None]

        @pl.when(jnp.logical_not(is_edge))
        def _():
            o_ref[...] += jnp.sum(neg_ent, axis=0, keepdims=True)[None]
    else:
        o_ref[...] += jnp.sum(neg_ent, axis=0, keepdims=True)[None]


def _vmem_capacity_bytes():
    """Physical per-core VMEM; conservative (v7x-sized) fallback if unknown."""
    try:
        info = pltpu.get_tpu_info()
        cap = getattr(info, "vmem_capacity_bytes", None)
        if cap:
            return int(cap)
    except Exception:
        pass
    return 64 * _MiB


def conditional_entropy_loss(x, *, tile_b=None, num_splits=1,
                             core_parallel=False, vmem_limit_bytes=None):
    """x: (B, C) logits -> scalar f32 loss == -mean_b sum_c p * log p."""
    B, C = x.shape
    itemsize = jnp.dtype(x.dtype).itemsize

    # ---- Generation-aware VMEM budget -------------------------------------
    cap = _vmem_capacity_bytes()
    if vmem_limit_bytes is None:
        # ~75% of physical, capped at 96 MiB: 96 MiB on 128-MiB v5e/v6e,
        # 48 MiB on 64-MiB v7x.  (Default scoped limit is only 16-32 MiB.)
        vmem_limit_bytes = min((cap * 3) // 4, 96 * _MiB)
    # Per-buffer cap on the raw input block: keeps several pipeline stages
    # while making per-step overhead a few % of the HBM roofline.
    input_block_cap = 16 * _MiB if cap >= 100 * _MiB else 10 * _MiB

    # ---- Tile sizing: honest footprint accounting --------------------------
    # 2x input block (double-buffered) + ~(3|4) full-tile f32 temporaries
    # (cast copy only for sub-32-bit inputs; s, e, e*s otherwise).
    n_f32_temps = 3 if itemsize == 4 else 4
    bytes_per_row = C * (2 * itemsize + 4 * n_f32_temps)
    row_align = 8 * max(1, 4 // itemsize)       # 8 f32, 16 bf16, 32 int8/fp8
    if tile_b is None:
        budget = (vmem_limit_bytes * 7) // 10   # headroom for out / compiler
        tile_b = budget // max(bytes_per_row, 1)
        tile_b = min(tile_b, input_block_cap // max(C * itemsize, 1))
        tile_b = max(row_align, (tile_b // row_align) * row_align)
    if tile_b >= B:
        tile_b = B                              # full-dim block is always legal
    else:
        tile_b = max(row_align, (tile_b // row_align) * row_align)

    total_tiles = -(-B // tile_b)

    # ---- Optional core split (v7x megacore); default 1 on single-TC chips --
    num_splits = max(1, min(int(num_splits), total_tiles))
    tiles_per_split = -(-total_tiles // num_splits)
    needs_mask = (num_splits * tiles_per_split * tile_b) != B

    def x_index_map(ci, ti):
        t = ci * tiles_per_split + ti
        # Clamp redundant (overflow) grid points onto the last real tile; the
        # kernel zeroes their contribution using the *unclamped* tile id.
        return (jnp.minimum(t, total_tiles - 1), 0)

    kernel = functools.partial(
        _cond_entropy_kernel,
        true_b=B, tile_b=tile_b, tiles_per_split=tiles_per_split,
        total_tiles=total_tiles, needs_mask=needs_mask)

    lead_sem = (pltpu.CORE_PARALLEL if (core_parallel and num_splits > 1)
                else pltpu.ARBITRARY)

    partials = pl.pallas_call(
        kernel,
        out_shape=jax.ShapeDtypeStruct((num_splits, 1, 1), jnp.float32),
        grid_spec=pltpu.PrefetchScalarGridSpec(
            num_scalar_prefetch=0,
            grid=(num_splits, tiles_per_split),
            in_specs=[pl.BlockSpec((tile_b, C), x_index_map)],
            out_specs=pl.BlockSpec((1, 1, 1), lambda ci, ti: (ci, 0, 0)),
        ),
        compiler_params=pltpu.CompilerParams(
            dimension_semantics=(lead_sem, pltpu.ARBITRARY),
            vmem_limit_bytes=int(vmem_limit_bytes)),
        cost_estimate=pl.CostEstimate(
            flops=5 * B * C,
            transcendentals=B * C + 2 * B,
            bytes_accessed=B * C * itemsize + num_splits * 4),
    )(x)

    # Finalize: sum the per-split partials, scale by -1/B (true batch size).
    return (-1.0 / B) * jnp.sum(partials)


def _reference(x):
    xf = x.astype(jnp.float32)
    p = jax.nn.softmax(xf, axis=1)
    logp = jax.nn.log_softmax(xf, axis=1)
    b = jnp.sum(p * logp, axis=1)
    return -1.0 * jnp.mean(b, axis=0)


if __name__ == "__main__":
    key = jax.random.PRNGKey(0)
    k1, k2, k3, k4 = jax.random.split(key, 4)

    # 1) Small single-block path (default tile sizing -> tile_b = B).
    x1 = jax.random.normal(k1, (8, 32), dtype=jnp.float32)
    l1 = conditional_entropy_loss(x1)
    jax.block_until_ready(l1)
    r1 = _reference(x1)
    assert jnp.allclose(l1, r1, rtol=1e-5, atol=1e-6), (l1, r1)

    # 2) Tiled + masked partial last tile (B=20, tile_b=8), default 1 split.
    x2 = 3.0 * jax.random.normal(k2, (20, 32), dtype=jnp.float32)
    l2 = conditional_entropy_loss(x2, tile_b=8)
    jax.block_until_ready(l2)
    r2 = _reference(x2)
    assert jnp.allclose(l2, r2, rtol=1e-5, atol=1e-6), (l2, r2)

    # 2b) Same input with an explicit 2-way split (exercises the clamped
    #     overflow grid point and the (num_splits,1,1) output layout).
    l2b = conditional_entropy_loss(x2, tile_b=8, num_splits=2)
    jax.block_until_ready(l2b)
    assert jnp.allclose(l2b, r2, rtol=1e-5, atol=1e-6), (l2b, r2)

    # 3) Tiled, exact multiple (no masking), bf16 input upcast in-kernel;
    #    tile_b=32 is a multiple of the bf16 packed-sublane tile (16).
    x3 = jax.random.normal(k3, (128, 256), dtype=jnp.bfloat16)
    l3 = conditional_entropy_loss(x3, tile_b=32)
    jax.block_until_ready(l3)
    r3 = _reference(x3)
    assert jnp.allclose(l3, r3, rtol=2e-3, atol=2e-3), (l3, r3)

    # 4) Non-multiple batch with a larger C (review request): the padded rows
    #    of the edge tile read uninitialized VMEM and must be fully masked.
    x4 = 2.0 * jax.random.normal(k4, (37, 160), dtype=jnp.float32)
    l4 = conditional_entropy_loss(x4, tile_b=16)
    jax.block_until_ready(l4)
    r4 = _reference(x4)
    assert jnp.allclose(l4, r4, rtol=1e-5, atol=1e-6), (l4, r4)

    print("KERNEL_OK")
</pallas_src>

<mosaic_0001>
module attributes {stable_mosaic.version = 11 : i64} {
  func.func @_cond_entropy_kernel(%arg0: i32, %arg1: i32, %arg2: memref<8x32xf32, #tpu.memory_space<vmem>>, %arg3: memref<1x1x1xf32, #tpu.memory_space<vmem>>) attributes {dimension_semantics = [#tpu.dimension_semantics<arbitrary>, #tpu.dimension_semantics<arbitrary>], iteration_bounds = array<i64: 1, 1>, scalar_prefetch = 0 : i64, scratch_operands = 0 : i64, tpu.core_type = #tpu.core_type<tc>, window_params = [{transform_indices = @transform_0, window_bounds = array<i64: 8, 32>}, {transform_indices = @transform_1, window_bounds = array<i64: 1, 1, 1>}]} {
    %c0_i32 = arith.constant 0 : i32
    %0 = arith.cmpi eq, %arg1, %c0_i32 : i32
    %1 = arith.extui %0 : i1 to i32
    %c0_i32_0 = arith.constant 0 : i32
    %2 = arith.cmpi ne, %1, %c0_i32_0 : i32
    scf.if %2 {
      %cst_11 = arith.constant 0.000000e+00 : f32
      %23 = vector.broadcast %cst_11 : f32 to vector<1x1x1xf32>
      %c0_12 = arith.constant 0 : index
      %c0_13 = arith.constant 0 : index
      %c0_14 = arith.constant 0 : index
      %24 = vector.load %arg3[%c0_12, %c0_13, %c0_14] : memref<1x1x1xf32, #tpu.memory_space<vmem>>, vector<1x1x1xf32>
      tpu.vector_store %arg3[%c0_12, %c0_13, %c0_14], %23 {strides = array<i32>} : memref<1x1x1xf32, #tpu.memory_space<vmem>>, vector<1x1x1xf32>,
    } else {
    }
    %c0 = arith.constant 0 : index
    %c0_1 = arith.constant 0 : index
    %3 = vector.load %arg2[%c0, %c0_1] : memref<8x32xf32, #tpu.memory_space<vmem>>, vector<8x32xf32>
    %cst = arith.constant dense<0xFF800000> : vector<8xf32>
    %4 = vector.multi_reduction <maximumf>, %3, %cst [1] : vector<8x32xf32> to vector<8xf32>
    %5 = vector.shape_cast %4 : vector<8xf32> to vector<8x1xf32>
    %6 = vector.broadcast %5 : vector<8x1xf32> to vector<8x32xf32>
    %7 = arith.subf %3, %6 : vector<8x32xf32>
    %8 = math.exp %7 : vector<8x32xf32>
    %cst_2 = arith.constant dense<0.000000e+00> : vector<8xf32>
    %9 = vector.multi_reduction <add>, %8, %cst_2 [1] : vector<8x32xf32> to vector<8xf32>
    %10 = vector.shape_cast %9 : vector<8xf32> to vector<8x1xf32>
    %11 = arith.mulf %8, %7 : vector<8x32xf32>
    %cst_3 = arith.constant dense<0.000000e+00> : vector<8xf32>
    %12 = vector.multi_reduction <add>, %11, %cst_3 [1] : vector<8x32xf32> to vector<8xf32>
    %13 = vector.shape_cast %12 : vector<8xf32> to vector<8x1xf32>
    %14 = arith.divf %13, %10 : vector<8x1xf32>
    %15 = math.log %10 : vector<8x1xf32>
    %16 = arith.subf %14, %15 : vector<8x1xf32>
    %c0_4 = arith.constant 0 : index
    %c0_5 = arith.constant 0 : index
    %c0_6 = arith.constant 0 : index
    %17 = vector.load %arg3[%c0_4, %c0_5, %c0_6] : memref<1x1x1xf32, #tpu.memory_space<vmem>>, vector<1x1x1xf32>
    %cst_7 = arith.constant dense<0.000000e+00> : vector<1xf32>
    %18 = vector.multi_reduction <add>, %16, %cst_7 [0] : vector<8x1xf32> to vector<1xf32>
    %19 = vector.shape_cast %18 : vector<1xf32> to vector<1x1xf32>
    %20 = vector.shape_cast %19 : vector<1x1xf32> to vector<1x1x1xf32>
    %21 = arith.addf %17, %20 : vector<1x1x1xf32>
    %c0_8 = arith.constant 0 : index
    %c0_9 = arith.constant 0 : index
    %c0_10 = arith.constant 0 : index
    %22 = vector.load %arg3[%c0_8, %c0_9, %c0_10] : memref<1x1x1xf32, #tpu.memory_space<vmem>>, vector<1x1x1xf32>
    tpu.vector_store %arg3[%c0_8, %c0_9, %c0_10], %21 {strides = array<i32>} : memref<1x1x1xf32, #tpu.memory_space<vmem>>, vector<1x1x1xf32>,
    return
  }
  func.func @transform_0(%arg0: i32, %arg1: i32) -> (i32, i32) {
    %c1_i32 = arith.constant 1 : i32
    %0 = arith.muli %arg0, %c1_i32 : i32
    %1 = arith.addi %0, %arg1 : i32
    %c0_i32 = arith.constant 0 : i32
    %2 = arith.minsi %1, %c0_i32 : i32
    %c0_i32_0 = arith.constant 0 : i32
    %c0_i32_1 = arith.constant 0 : i32
    return %2, %c0_i32_0 : i32, i32
  }
  func.func @transform_1(%arg0: i32, %arg1: i32) -> (i32, i32, i32) {
    %c0_i32 = arith.constant 0 : i32
    %c0_i32_0 = arith.constant 0 : i32
    %c0_i32_1 = arith.constant 0 : i32
    return %arg0, %c0_i32, %c0_i32_0 : i32, i32, i32
  }
}

</mosaic_0001>

<llo_original>
// kernel: tpu_custom_call.1
$region0: #{tpu_custom_call.1}
  #allocation0 [shape = 'u32[]', space=smem, size = 0x4, offset = 0x4, fixed_abs, tag = 'smem constant byte address 0x4 - core index']
  #allocation1 [shape = 'u32[144,128]{1,0:T(1,128)}', space=vmem, size = 0x12000, scoped, tag = 'internal scratch']
  %s0 = inlined_call_operand.hbm [shape: f32[8,32], index: 0, kind: input, shape index: {}]
  %s1 = inlined_call_operand.hbm [shape: f32[1,1,1], index: 1, kind: output, shape index: {}]
  %s2 = sld [smem:[#allocation0]]
  $region22: #{tpu_custom_call.1} parent=0
    _
  %s4 = ssub.s32 1, %s2
  %s5 = scalar_select 0, %s4, %s2
  $region1: #{tpu_custom_call.1} parent=0
    #allocation2 [shape = 'u8[4096]{0}', space=vmem, size = 0x1000, scoped, tag = 'input window, operand 0, single buffered']
    #allocation3 [shape = 's32[1]{0}', space=sflag, size = 0x4, scoped, tag = 'scoped memory for tpu_custom_call.1']
    #allocation4 [shape = 's32[1]{0}', space=sflag, size = 0x4, scoped, tag = 'scoped memory for tpu_custom_call.1']
    #allocation5 [shape = 'u8[512]{0}', space=vmem, size = 0x400, scoped, tag = 'output window, operand 0, single buffered']
    %6 = vsyncpa [#allocation3], 0
    %7 = vsyncpa [#allocation4], 0
    // Predicated region
    $region2: #{tpu_custom_call.1} parent=1 // pred_check
      _
    $region3: #{tpu_custom_call.1} parent=1 // pred_check_branch
      %9 = sbr.rel (0) target = $region5
    $region4: #{tpu_custom_call.1} parent=1 // pred_region
      %s10 = sadd.s32 0, 0
      %p11 = scmp.lt.s32.totalorder %s10, 0
      %s12 = scalar_select %p11, %s10, 0
      %s14 = ssub.s32 128, 128
      %15 = vsyncadd [#allocation3], %s14
      %s16 = smul.addr %s12, 128
      %s17 = scalar_lea.hbm %s0, %s16
      %s19 = sshll.u32 [#allocation2], 4
      %s20 = int_to_ptr.vmem [resolvable:$true] %s19
      %22 = dma.hbm_to_vmem [thread:$0]  %s17, 128, %s20, [#allocation3]
    $region5: #{tpu_custom_call.1} parent=1 // pred_fallthru
      _
    // Predicated region
    $region6: #{tpu_custom_call.1} parent=1 // pred_check
      _
    $region7: #{tpu_custom_call.1} parent=1 // pred_check_branch
      %24 = sbr.rel (0) target = $region9
    $region8: #{tpu_custom_call.1} parent=1 // pred_region
      %25 = dma.done [#allocation3], 128
    $region9: #{tpu_custom_call.1} parent=1 // pred_fallthru
      _
    %s26 = sadd.s32 0, 0
    %p27 = scmp.lt.s32.totalorder %s26, 0
    %s28 = scalar_select %p27, %s26, 0
    %p29 = scmp.eq.s32.totalorder 0, 0
    // Predicated region
    $region10: #{tpu_custom_call.1} parent=1 // pred_check
      %p30 = pneg %p29
    $region11: #{tpu_custom_call.1} parent=1 // pred_check_branch
      %32 = sbr.rel (%p30) target = $region13
    $region12: #{tpu_custom_call.1} parent=1 // pred_region
      %vm33 = vcmask 0
      %34 = vst.msk [vmem:[#allocation5] sm:$0x1] %vm33, 0.0
    $region13: #{tpu_custom_call.1} parent=1 // pred_fallthru
      _
    %v35 = vld [vmem:[#allocation2] sm:$0xff]
    %vm36 = vcmask 261120
    %v37 = vsel %vm36, %v35, -inf
    %38 = vmax.xlane.f32.xlu0 %v37
    %v39 = vpop.xlane.xlu0 %38
    %v40 = vsub.f32 %v35, %v39
    %v41 = vmul.f32 %v40, 1.442695
    %v42 = vpow.pop %v41
    %v43 = vsel %vm36, %v42, 0.0
    %44 = vadd.xlane.f32.xlu0 %v43
    %v45 = vpop.xlane.xlu0 %44
    %v46 = vmul.f32 %v42, %v40
    %v47 = vsel %vm36, %v46, 0.0
    %48 = vadd.xlane.f32.xlu0 %v47
    %v49 = vpop.xlane.xlu0 %48
    %v50 = vrcp.pop %v45
    %v51 = vmul.f32 %v49, %v50
    %v52 = vlog2.pop %v45
    %v53 = vmul.f32 %v52, 0.6931472
    %v54 = vsub.f32 %v51, %v53
    %v55 = vld [vmem:[#allocation5] sm:$0x1]
    %v56 = vrot.slane %v54, 4
    %v57 = vadd.f32 %v54, %v56
    %v58 = vrot.slane %v57, 2
    %v59 = vadd.f32 %v57, %v58
    %v60 = vrot.slane %v59, 1
    %v61 = vadd.f32 %v59, %v60
    %v62 = vadd.f32 %v55, %v61
    %vm63 = vcmask 0
    %64 = vst.msk [vmem:[#allocation5] sm:$0x1] %vm63, %v62
    // Predicated region
    $region14: #{tpu_custom_call.1} parent=1 // pred_check
      _
    $region15: #{tpu_custom_call.1} parent=1 // pred_check_branch
      %66 = sbr.rel (0) target = $region17
    $region16: #{tpu_custom_call.1} parent=1 // pred_region
      %s68 = ssub.s32 16, 16
      %69 = vsyncadd [#allocation4], %s68
      %s71 = sshll.u32 [#allocation5], 4
      %s72 = int_to_ptr.vmem [resolvable:$true] %s71
      %74 = dma.vmem_to_hbm [thread:$0]  %s72, 16, %s1, [#allocation4]
    $region17: #{tpu_custom_call.1} parent=1 // pred_fallthru
      _
    // Predicated region
    $region18: #{tpu_custom_call.1} parent=1 // pred_check
      _
    $region19: #{tpu_custom_call.1} parent=1 // pred_check_branch
      %76 = sbr.rel (0) target = $region21
    $region20: #{tpu_custom_call.1} parent=1 // pred_region
      %77 = dma.done [#allocation4], 16
    $region21: #{tpu_custom_call.1} parent=1 // pred_fallthru
      _
    %78 = vsyncpa [#allocation3], 1
    %79 = vsyncpa [#allocation4], 1

</llo_original>
